<compile_context>
chip_gen: v7x
topology: tpu7x:2x2x1
jax: 0.10.0
libtpu: 0.0.40
codegen_flags: <defaults>
</compile_context>

<pallas_src>
import functools
import math

import jax
import jax.numpy as jnp
from jax.experimental import pallas as pl
from jax.experimental.pallas import tpu as pltpu


def _round_up(x, m):
    return ((x + m - 1) // m) * m


def _mlp_train_kernel(x_ref, m1_ref, w1_ref, b1_ref, m2_ref, w2_ref, b2_ref,
                      o_ref, *, inv_keep1, inv_keep2):
    # Dropout-1: mask is {0,1} in bf16; the 1/(1-p1) rescale is folded into the
    # much smaller (TM, hidden) post-matmul tensor (it commutes through the linear).
    x = x_ref[...] * m1_ref[...]
    h = jnp.dot(x, w1_ref[...], preferred_element_type=jnp.float32)
    h = h * inv_keep1 + b1_ref[...]
    h = jnp.maximum(h, 0.0)                                   # ReLU
    # Dropout-2 (inverted dropout, torch.nn.Dropout training semantics).
    h = h * (m2_ref[...].astype(jnp.float32) * inv_keep2)
    out = jnp.dot(h.astype(w2_ref.dtype), w2_ref[...],
                  preferred_element_type=jnp.float32) + b2_ref[...]
    o_ref[...] = out.astype(o_ref.dtype)


def _mlp_eval_kernel(x_ref, w1_ref, b1_ref, w2_ref, b2_ref, o_ref):
    # module.eval(): dropout layers are identities.
    h = jnp.dot(x_ref[...], w1_ref[...],
                preferred_element_type=jnp.float32) + b1_ref[...]
    h = jnp.maximum(h, 0.0)
    out = jnp.dot(h.astype(w2_ref.dtype), w2_ref[...],
                  preferred_element_type=jnp.float32) + b2_ref[...]
    o_ref[...] = out.astype(o_ref.dtype)


def _pad2d(a, rows, cols, dtype):
    out = jnp.zeros((rows, cols), dtype=dtype)
    return out.at[:a.shape[0], :a.shape[1]].set(a.astype(dtype))


def linear_classifier_forward(x, params, *, dropout_prob_1, dropout_prob_2,
                              key=None, training=True):
    """Forward pass of LinearClassifier via a single batch-tiled Pallas TPU kernel."""
    w1, b1, w2, b2 = params
    B = x.shape[0]
    x2d = x.reshape(B, -1)                        # torch.nn.Flatten()
    K = x2d.shape[1]
    Hd = w1.shape[1]
    N = w2.shape[1]

    # --- Pad to vreg/MXU-friendly shapes (lane = 128, sublane = 8). ---
    H_pad = max(128, _round_up(Hd, 128))          # hidden 32 -> 128
    N_pad = max(128, _round_up(N, 128))           # outputs 10 -> 128 (unmasked lane-dense vst)
    TM = 256 if B >= 256 else _round_up(B, 8)     # 256-row tiles for v6e/v7x MXU; tiny B -> 1 tile
    B_pad = _round_up(B, TM)

    cdt = jnp.bfloat16                            # bf16 MXU inputs, f32 accumulation
    xp = _pad2d(x2d, B_pad, K, cdt)
    w1p = _pad2d(w1, K, H_pad, cdt)
    w2p = _pad2d(w2, H_pad, N_pad, cdt)           # zero-padded rows/cols keep results exact
    b1p = _pad2d(b1.reshape(1, -1), 1, H_pad, jnp.float32)
    b2p = _pad2d(b2.reshape(1, -1), 1, N_pad, jnp.float32)

    grid = (B_pad // TM,)
    x_spec = pl.BlockSpec((TM, K), lambda i: (i, 0))
    w1_spec = pl.BlockSpec((K, H_pad), lambda i: (0, 0))      # weights VMEM-resident
    b1_spec = pl.BlockSpec((1, H_pad), lambda i: (0, 0))
    w2_spec = pl.BlockSpec((H_pad, N_pad), lambda i: (0, 0))
    b2_spec = pl.BlockSpec((1, N_pad), lambda i: (0, 0))
    out_spec = pl.BlockSpec((TM, N_pad), lambda i: (i, 0))

    flops = 2 * B_pad * (K * H_pad + H_pad * N_pad)
    bytes_accessed = (xp.size * 2 + w1p.size * 2 + w2p.size * 2
                      + (b1p.size + b2p.size) * 4 + B_pad * N_pad * 4)

    compiler_params = pltpu.CompilerParams(
        dimension_semantics=("parallel",))        # shard batch tiles across TCs on v7x

    if training and (dropout_prob_1 > 0.0 or dropout_prob_2 > 0.0):
        if key is None:
            key = jax.random.PRNGKey(0)
        k1, k2 = jax.random.split(key)
        # TODO(synk): PyTorch's dropout RNG stream cannot be bit-matched; masks are drawn
        # with jax.random in the wrapper (pltpu.prng_* has no interpret-mode lowering)
        # and the masking/scaling itself is done inside the kernel.
        m1 = jax.random.bernoulli(k1, 1.0 - dropout_prob_1, (B_pad, K)).astype(cdt)
        m2 = jax.random.bernoulli(k2, 1.0 - dropout_prob_2, (B_pad, H_pad)).astype(cdt)
        bytes_accessed += m1.size * 2 + m2.size * 2
        kernel = functools.partial(
            _mlp_train_kernel,
            inv_keep1=float(1.0 / (1.0 - dropout_prob_1)) if dropout_prob_1 > 0.0 else 1.0,
            inv_keep2=float(1.0 / (1.0 - dropout_prob_2)) if dropout_prob_2 > 0.0 else 1.0,
        )
        in_specs = [x_spec,
                    pl.BlockSpec((TM, K), lambda i: (i, 0)),
                    w1_spec, b1_spec,
                    pl.BlockSpec((TM, H_pad), lambda i: (i, 0)),
                    w2_spec, b2_spec]
        args = (xp, m1, w1p, b1p, m2, w2p, b2p)
    else:
        kernel = _mlp_eval_kernel
        in_specs = [x_spec, w1_spec, b1_spec, w2_spec, b2_spec]
        args = (xp, w1p, b1p, w2p, b2p)

    out_padded = pl.pallas_call(
        kernel,
        out_shape=jax.ShapeDtypeStruct((B_pad, N_pad), jnp.float32),
        grid=grid,
        in_specs=in_specs,
        out_specs=out_spec,
        compiler_params=compiler_params,
        cost_estimate=pl.CostEstimate(flops=flops, transcendentals=0,
                                      bytes_accessed=bytes_accessed),
    )(*args)

    return out_padded[:B, :N]


def init_params(key, in_features, num_hidden, num_outputs):
    """Deterministic init mimicking torch.nn.Linear defaults (uniform +/- 1/sqrt(fan_in))."""
    k1, k2, k3, k4 = jax.random.split(key, 4)
    bound1 = 1.0 / math.sqrt(in_features)
    bound2 = 1.0 / math.sqrt(num_hidden)
    w1 = jax.random.uniform(k1, (in_features, num_hidden), jnp.float32, -bound1, bound1)
    b1 = jax.random.uniform(k2, (1, num_hidden), jnp.float32, -bound1, bound1)
    w2 = jax.random.uniform(k3, (num_hidden, num_outputs), jnp.float32, -bound2, bound2)
    b2 = jax.random.uniform(k4, (1, num_outputs), jnp.float32, -bound2, bound2)
    return (w1, b1, w2, b2)


if __name__ == "__main__":
    key = jax.random.PRNGKey(0)
    kx, kp, kd = jax.random.split(key, 3)

    # Small shapes consistent with the module's forward: NCHW image input.
    B, C, H, W = 2, 4, 16, 16
    num_hidden, num_outputs = 32, 10
    dropout_prob_1, dropout_prob_2 = 0.25, 0.5

    x = jax.random.normal(kx, (B, C, H, W), dtype=jnp.float32)
    params = init_params(kp, C * H * W, num_hidden, num_outputs)

    # Training-mode forward (PyTorch modules default to train(), so dropout is active).
    out_train = linear_classifier_forward(
        x, params, dropout_prob_1=dropout_prob_1, dropout_prob_2=dropout_prob_2,
        key=kd, training=True)
    jax.block_until_ready(out_train)
    assert out_train.shape == (B, num_outputs) and out_train.dtype == jnp.float32

    # Eval-mode forward (dropout = identity) checked against a pure-JAX reference
    # that uses the same bf16 operand casts with f32 accumulation.
    out_eval = linear_classifier_forward(
        x, params, dropout_prob_1=dropout_prob_1, dropout_prob_2=dropout_prob_2,
        training=False)
    jax.block_until_ready(out_eval)
    w1, b1, w2, b2 = params
    xb = x.reshape(B, -1).astype(jnp.bfloat16)
    h_ref = jnp.dot(xb, w1.astype(jnp.bfloat16), preferred_element_type=jnp.float32) + b1
    h_ref = jnp.maximum(h_ref, 0.0).astype(jnp.bfloat16)
    ref = jnp.dot(h_ref, w2.astype(jnp.bfloat16), preferred_element_type=jnp.float32) + b2
    assert jnp.allclose(out_eval, ref, atol=1e-2, rtol=1e-2), "eval-mode mismatch vs reference"

    print("KERNEL_OK")
</pallas_src>

<mosaic_0001>
module attributes {stable_mosaic.version = 11 : i64} {
  func.func @_mlp_train_kernel(%arg0: i32, %arg1: memref<8x1024xbf16, #tpu.memory_space<vmem>>, %arg2: memref<8x1024xbf16, #tpu.memory_space<vmem>>, %arg3: memref<1024x128xbf16, #tpu.memory_space<vmem>>, %arg4: memref<1x128xf32, #tpu.memory_space<vmem>>, %arg5: memref<8x128xbf16, #tpu.memory_space<vmem>>, %arg6: memref<128x128xbf16, #tpu.memory_space<vmem>>, %arg7: memref<1x128xf32, #tpu.memory_space<vmem>>, %arg8: memref<8x128xf32, #tpu.memory_space<vmem>>) attributes {dimension_semantics = [#tpu.dimension_semantics<parallel>], iteration_bounds = array<i64: 1>, scalar_prefetch = 0 : i64, scratch_operands = 0 : i64, tpu.core_type = #tpu.core_type<tc>, window_params = [{transform_indices = @transform_0, window_bounds = array<i64: 8, 1024>}, {transform_indices = @transform_1, window_bounds = array<i64: 8, 1024>}, {pipeline_mode = #tpu.pipeline_mode<synchronous>, transform_indices = @transform_2, window_bounds = array<i64: 1024, 128>}, {pipeline_mode = #tpu.pipeline_mode<synchronous>, transform_indices = @transform_3, window_bounds = array<i64: 1, 128>}, {transform_indices = @transform_4, window_bounds = array<i64: 8, 128>}, {pipeline_mode = #tpu.pipeline_mode<synchronous>, transform_indices = @transform_5, window_bounds = array<i64: 128, 128>}, {pipeline_mode = #tpu.pipeline_mode<synchronous>, transform_indices = @transform_6, window_bounds = array<i64: 1, 128>}, {transform_indices = @transform_7, window_bounds = array<i64: 8, 128>}]} {
    %c0 = arith.constant 0 : index
    %c0_0 = arith.constant 0 : index
    %0 = vector.load %arg1[%c0, %c0_0] : memref<8x1024xbf16, #tpu.memory_space<vmem>>, vector<8x1024xbf16>
    %c0_1 = arith.constant 0 : index
    %c0_2 = arith.constant 0 : index
    %1 = vector.load %arg2[%c0_1, %c0_2] : memref<8x1024xbf16, #tpu.memory_space<vmem>>, vector<8x1024xbf16>
    %2 = arith.mulf %0, %1 : vector<8x1024xbf16>
    %c0_3 = arith.constant 0 : index
    %c0_4 = arith.constant 0 : index
    %3 = vector.load %arg3[%c0_3, %c0_4] : memref<1024x128xbf16, #tpu.memory_space<vmem>>, vector<1024x128xbf16>
    %cst = arith.constant dense<0.000000e+00> : vector<8x128xf32>
    %4 = tpu.matmul %2, %3, %cst {dimension_numbers = #tpu.dot_dimension_numbers<[1], [0], [0], [1], [0, 0, 1, 1], [], []>} : vector<8x1024xbf16>, vector<1024x128xbf16>, vector<8x128xf32> -> vector<8x128xf32>
    %cst_5 = arith.constant 1.33333337 : f32
    %5 = vector.broadcast %cst_5 : f32 to vector<8x128xf32>
    %6 = arith.mulf %4, %5 : vector<8x128xf32>
    %c0_6 = arith.constant 0 : index
    %c0_7 = arith.constant 0 : index
    %7 = vector.load %arg4[%c0_6, %c0_7] : memref<1x128xf32, #tpu.memory_space<vmem>>, vector<1x128xf32>
    %8 = vector.broadcast %7 : vector<1x128xf32> to vector<8x128xf32>
    %9 = arith.addf %6, %8 : vector<8x128xf32>
    %cst_8 = arith.constant 0.000000e+00 : f32
    %10 = vector.broadcast %cst_8 : f32 to vector<8x128xf32>
    %11 = arith.maximumf %9, %10 : vector<8x128xf32>
    %c0_9 = arith.constant 0 : index
    %c0_10 = arith.constant 0 : index
    %12 = vector.load %arg5[%c0_9, %c0_10] : memref<8x128xbf16, #tpu.memory_space<vmem>>, vector<8x128xbf16>
    %13 = arith.extf %12 : vector<8x128xbf16> to vector<8x128xf32>
    %cst_11 = arith.constant 2.000000e+00 : f32
    %14 = vector.broadcast %cst_11 : f32 to vector<8x128xf32>
    %15 = arith.mulf %13, %14 : vector<8x128xf32>
    %16 = arith.mulf %11, %15 : vector<8x128xf32>
    %17 = arith.truncf %16 : vector<8x128xf32> to vector<8x128xbf16>
    %c0_12 = arith.constant 0 : index
    %c0_13 = arith.constant 0 : index
    %18 = vector.load %arg6[%c0_12, %c0_13] : memref<128x128xbf16, #tpu.memory_space<vmem>>, vector<128x128xbf16>
    %cst_14 = arith.constant dense<0.000000e+00> : vector<8x128xf32>
    %19 = tpu.matmul %17, %18, %cst_14 {dimension_numbers = #tpu.dot_dimension_numbers<[1], [0], [0], [1], [0, 0, 1, 1], [], []>} : vector<8x128xbf16>, vector<128x128xbf16>, vector<8x128xf32> -> vector<8x128xf32>
    %c0_15 = arith.constant 0 : index
    %c0_16 = arith.constant 0 : index
    %20 = vector.load %arg7[%c0_15, %c0_16] : memref<1x128xf32, #tpu.memory_space<vmem>>, vector<1x128xf32>
    %21 = vector.broadcast %20 : vector<1x128xf32> to vector<8x128xf32>
    %22 = arith.addf %19, %21 : vector<8x128xf32>
    %c0_17 = arith.constant 0 : index
    %c0_18 = arith.constant 0 : index
    %23 = vector.load %arg8[%c0_17, %c0_18] : memref<8x128xf32, #tpu.memory_space<vmem>>, vector<8x128xf32>
    tpu.vector_store %arg8[%c0_17, %c0_18], %22 {strides = array<i32>} : memref<8x128xf32, #tpu.memory_space<vmem>>, vector<8x128xf32>,
    return
  }
  func.func @transform_0(%arg0: i32) -> (i32, i32) {
    %c0_i32 = arith.constant 0 : i32
    %c0_i32_0 = arith.constant 0 : i32
    return %arg0, %c0_i32 : i32, i32
  }
  func.func @transform_1(%arg0: i32) -> (i32, i32) {
    %c0_i32 = arith.constant 0 : i32
    %c0_i32_0 = arith.constant 0 : i32
    return %arg0, %c0_i32 : i32, i32
  }
  func.func @transform_2(%arg0: i32) -> (i32, i32) {
    %c0_i32 = arith.constant 0 : i32
    %c0_i32_0 = arith.constant 0 : i32
    %c0_i32_1 = arith.constant 0 : i32
    return %c0_i32, %c0_i32_0 : i32, i32
  }
  func.func @transform_3(%arg0: i32) -> (i32, i32) {
    %c0_i32 = arith.constant 0 : i32
    %c0_i32_0 = arith.constant 0 : i32
    %c0_i32_1 = arith.constant 0 : i32
    return %c0_i32, %c0_i32_0 : i32, i32
  }
  func.func @transform_4(%arg0: i32) -> (i32, i32) {
    %c0_i32 = arith.constant 0 : i32
    %c0_i32_0 = arith.constant 0 : i32
    return %arg0, %c0_i32 : i32, i32
  }
  func.func @transform_5(%arg0: i32) -> (i32, i32) {
    %c0_i32 = arith.constant 0 : i32
    %c0_i32_0 = arith.constant 0 : i32
    %c0_i32_1 = arith.constant 0 : i32
    return %c0_i32, %c0_i32_0 : i32, i32
  }
  func.func @transform_6(%arg0: i32) -> (i32, i32) {
    %c0_i32 = arith.constant 0 : i32
    %c0_i32_0 = arith.constant 0 : i32
    %c0_i32_1 = arith.constant 0 : i32
    return %c0_i32, %c0_i32_0 : i32, i32
  }
  func.func @transform_7(%arg0: i32) -> (i32, i32) {
    %c0_i32 = arith.constant 0 : i32
    %c0_i32_0 = arith.constant 0 : i32
    return %arg0, %c0_i32 : i32, i32
  }
}

</mosaic_0001>

<llo_original>
// kernel: tpu_custom_call.1
$region0: #{tpu_custom_call.1}
  #allocation0 [shape = 'u32[]', space=smem, size = 0x4, offset = 0x4, fixed_abs, tag = 'smem constant byte address 0x4 - core index']
  #allocation1 [shape = 'u32[144,128]{1,0:T(1,128)}', space=vmem, size = 0x12000, scoped, tag = 'internal scratch']
  %s0 = inlined_call_operand.hbm [shape: bf16[8,1024], index: 0, kind: input, shape index: {}]
  %s1 = inlined_call_operand.hbm [shape: bf16[8,1024], index: 1, kind: input, shape index: {}]
  %s2 = inlined_call_operand.hbm [shape: bf16[1024,128], index: 2, kind: input, shape index: {}]
  %s3 = inlined_call_operand.vmem [shape: f32[1,128], index: 3, kind: input, shape index: {}]
  %s4 = inlined_call_operand.vmem [shape: bf16[8,128], index: 4, kind: input, shape index: {}]
  %s5 = inlined_call_operand.hbm [shape: bf16[128,128], index: 5, kind: input, shape index: {}]
  %s6 = inlined_call_operand.vmem [shape: f32[1,128], index: 6, kind: input, shape index: {}]
  %s7 = inlined_call_operand.hbm [shape: f32[8,128], index: 7, kind: output, shape index: {}]
  %s8 = sld [smem:[#allocation0]]
  $region54: #{tpu_custom_call.1} parent=0
    _
  %s10 = ssub.s32 1, %s8
  %s11 = scalar_select 0, %s10, %s8
  $region1: #{tpu_custom_call.1} parent=0
    #allocation2 [shape = 'u8[16384]{0}', space=vmem, size = 0x4000, scoped, tag = 'input window, operand 0, single buffered']
    #allocation3 [shape = 's32[1]{0}', space=sflag, size = 0x4, scoped, tag = 'scoped memory for tpu_custom_call.1']
    #allocation4 [shape = 's32[1]{0}', space=sflag, size = 0x4, scoped, tag = 'scoped memory for tpu_custom_call.1']
    #allocation5 [shape = 'u8[16384]{0}', space=vmem, size = 0x4000, scoped, tag = 'input window, operand 1, single buffered']
    #allocation6 [shape = 's32[1]{0}', space=sflag, size = 0x4, scoped, tag = 'scoped memory for tpu_custom_call.1']
    #allocation7 [shape = 'u8[262144]{0}', space=vmem, size = 0x40000, scoped, tag = 'input window, operand 2, single buffered']
    #allocation8 [shape = 'u8[32768]{0}', space=vmem, size = 0x8000, scoped, tag = 'input window, operand 5, single buffered']
    #allocation9 [shape = 's32[1]{0}', space=sflag, size = 0x4, scoped, tag = 'scoped memory for tpu_custom_call.1']
    #allocation10 [shape = 'u8[4096]{0}', space=vmem, size = 0x1000, scoped, tag = 'output window, operand 0, single buffered']
    %12 = vsyncpa [#allocation3], 0
    %13 = vsyncpa [#allocation6], 0
    %14 = vsyncpa [#allocation9], 0
    %15 = vsyncpa [#allocation4], 0
    // Predicated region
    $region2: #{tpu_custom_call.1} parent=1 // pred_check
      _
    $region3: #{tpu_custom_call.1} parent=1 // pred_check_branch
      %17 = sbr.rel (0) target = $region5
    $region4: #{tpu_custom_call.1} parent=1 // pred_region
      %s19 = ssub.s32 512, 512
      %20 = vsyncadd [#allocation3], %s19
      %s22 = sshll.u32 [#allocation2], 4
      %s23 = int_to_ptr.vmem [resolvable:$true] %s22
      %25 = dma.hbm_to_vmem [thread:$0]  %s0, 512, %s23, [#allocation3]
    $region5: #{tpu_custom_call.1} parent=1 // pred_fallthru
      _
    // Predicated region
    $region6: #{tpu_custom_call.1} parent=1 // pred_check
      _
    $region7: #{tpu_custom_call.1} parent=1 // pred_check_branch
      %27 = sbr.rel (0) target = $region9
    $region8: #{tpu_custom_call.1} parent=1 // pred_region
      %s29 = ssub.s32 512, 512
      %30 = vsyncadd [#allocation6], %s29
      %s32 = sshll.u32 [#allocation5], 4
      %s33 = int_to_ptr.vmem [resolvable:$true] %s32
      %35 = dma.hbm_to_vmem [thread:$0]  %s1, 512, %s33, [#allocation6]
    $region9: #{tpu_custom_call.1} parent=1 // pred_fallthru
      _
    // Predicated region
    $region10: #{tpu_custom_call.1} parent=1 // pred_check
      _
    $region11: #{tpu_custom_call.1} parent=1 // pred_check_branch
      %37 = sbr.rel (0) target = $region13
    $region12: #{tpu_custom_call.1} parent=1 // pred_region
      %s39 = ssub.s32 8192, 8192
      %40 = vsyncadd [#allocation6], %s39
      %s41 = sshll.u32 [#allocation7], 4
      %s42 = int_to_ptr.vmem [resolvable:$true] %s41
      %47 = dma.hbm_to_vmem [thread:$0]  %s2, 8192, %s42, [#allocation6], 64, 64, 4
    $region13: #{tpu_custom_call.1} parent=1 // pred_fallthru
      _
    // Predicated region
    $region14: #{tpu_custom_call.1} parent=1 // pred_check
      _
    $region15: #{tpu_custom_call.1} parent=1 // pred_check_branch
      %49 = sbr.rel (0) target = $region17
    $region16: #{tpu_custom_call.1} parent=1 // pred_region
      _
    $region17: #{tpu_custom_call.1} parent=1 // pred_fallthru
      _
    // Predicated region
    $region18: #{tpu_custom_call.1} parent=1 // pred_check
      _
    $region19: #{tpu_custom_call.1} parent=1 // pred_check_branch
      %51 = sbr.rel (0) target = $region21
    $region20: #{tpu_custom_call.1} parent=1 // pred_region
      _
    $region21: #{tpu_custom_call.1} parent=1 // pred_fallthru
      _
    // Predicated region
    $region22: #{tpu_custom_call.1} parent=1 // pred_check
      _
    $region23: #{tpu_custom_call.1} parent=1 // pred_check_branch
      %53 = sbr.rel (0) target = $region25
    $region24: #{tpu_custom_call.1} parent=1 // pred_region
      %s55 = ssub.s32 1024, 1024
      %56 = vsyncadd [#allocation9], %s55
      %s57 = sshll.u32 [#allocation8], 4
      %s58 = int_to_ptr.vmem [resolvable:$true] %s57
      %63 = dma.hbm_to_vmem [thread:$0]  %s5, 1024, %s58, [#allocation9], 64, 64, 4
    $region25: #{tpu_custom_call.1} parent=1 // pred_fallthru
      _
    // Predicated region
    $region26: #{tpu_custom_call.1} parent=1 // pred_check
      _
    $region27: #{tpu_custom_call.1} parent=1 // pred_check_branch
      %65 = sbr.rel (0) target = $region29
    $region28: #{tpu_custom_call.1} parent=1 // pred_region
      _
    $region29: #{tpu_custom_call.1} parent=1 // pred_fallthru
      _
    // Predicated region
    $region30: #{tpu_custom_call.1} parent=1 // pred_check
      _
    $region31: #{tpu_custom_call.1} parent=1 // pred_check_branch
      %67 = sbr.rel (0) target = $region33
    $region32: #{tpu_custom_call.1} parent=1 // pred_region
      %68 = dma.done [#allocation3], 512
    $region33: #{tpu_custom_call.1} parent=1 // pred_fallthru
      _
    // Predicated region
    $region34: #{tpu_custom_call.1} parent=1 // pred_check
      _
    $region35: #{tpu_custom_call.1} parent=1 // pred_check_branch
      %70 = sbr.rel (0) target = $region37
    $region36: #{tpu_custom_call.1} parent=1 // pred_region
      %71 = dma.done [#allocation6], 512
    $region37: #{tpu_custom_call.1} parent=1 // pred_fallthru
      _
    // Predicated region
    $region38: #{tpu_custom_call.1} parent=1 // pred_check
      _
    $region39: #{tpu_custom_call.1} parent=1 // pred_check_branch
      %73 = sbr.rel (0) target = $region41
    $region40: #{tpu_custom_call.1} parent=1 // pred_region
      %74 = dma.done [#allocation6], 8192
    $region41: #{tpu_custom_call.1} parent=1 // pred_fallthru
      _
    // Predicated region
    $region42: #{tpu_custom_call.1} parent=1 // pred_check
      _
    $region43: #{tpu_custom_call.1} parent=1 // pred_check_branch
      %76 = sbr.rel (0) target = $region45
    $region44: #{tpu_custom_call.1} parent=1 // pred_region
      %77 = dma.done [#allocation9], 1024
    $region45: #{tpu_custom_call.1} parent=1 // pred_fallthru
      _
    %v79 = vld [vmem:[#allocation2] sm:$0xff]
    %v80 = vld [vmem:[#allocation2 + $0x8] sm:$0xff]
    %v81 = vld [vmem:[#allocation2 + $0x10] sm:$0xff]
    %v82 = vld [vmem:[#allocation2 + $0x18] sm:$0xff]
    %v83 = vld [vmem:[#allocation5] sm:$0xff]
    %v84 = vld [vmem:[#allocation5 + $0x8] sm:$0xff]
    %v85 = vld [vmem:[#allocation5 + $0x10] sm:$0xff]
    %v86 = vld [vmem:[#allocation5 + $0x18] sm:$0xff]
    %v87 = vmul.bf16 %v79, %v83
    %v88 = vmul.bf16 %v80, %v84
    %v89 = vmul.bf16 %v81, %v85
    %v90 = vmul.bf16 %v82, %v86
    %v91 = vld [vmem:[#allocation7] sm:$0xf]
    %v92 = vld [vmem:[#allocation7 + $0x4] sm:$0xf]
    %v93 = vld [vmem:[#allocation7 + $0x8] sm:$0xf]
    %v94 = vld [vmem:[#allocation7 + $0xc] sm:$0xf]
    %v95 = vld [vmem:[#allocation7 + $0x10] sm:$0xf]
    %v96 = vld [vmem:[#allocation7 + $0x14] sm:$0xf]
    %v97 = vld [vmem:[#allocation7 + $0x18] sm:$0xf]
    %v98 = vld [vmem:[#allocation7 + $0x1c] sm:$0xf]
    %v99 = vld [vmem:[#allocation7 + $0x20] sm:$0xf]
    %v100 = vld [vmem:[#allocation7 + $0x24] sm:$0xf]
    %v101 = vld [vmem:[#allocation7 + $0x28] sm:$0xf]
    %v102 = vld [vmem:[#allocation7 + $0x2c] sm:$0xf]
    %v103 = vld [vmem:[#allocation7 + $0x30] sm:$0xf]
    %v104 = vld [vmem:[#allocation7 + $0x34] sm:$0xf]
    %v105 = vld [vmem:[#allocation7 + $0x38] sm:$0xf]
    %v106 = vld [vmem:[#allocation7 + $0x3c] sm:$0xf]
    %v107 = vld [vmem:[#allocation7 + $0x40] sm:$0xf]
    %v108 = vld [vmem:[#allocation7 + $0x44] sm:$0xf]
    %v109 = vld [vmem:[#allocation7 + $0x48] sm:$0xf]
    %v110 = vld [vmem:[#allocation7 + $0x4c] sm:$0xf]
    %v111 = vld [vmem:[#allocation7 + $0x50] sm:$0xf]
    %v112 = vld [vmem:[#allocation7 + $0x54] sm:$0xf]
    %v113 = vld [vmem:[#allocation7 + $0x58] sm:$0xf]
    %v114 = vld [vmem:[#allocation7 + $0x5c] sm:$0xf]
    %v115 = vld [vmem:[#allocation7 + $0x60] sm:$0xf]
    %v116 = vld [vmem:[#allocation7 + $0x64] sm:$0xf]
    %v117 = vld [vmem:[#allocation7 + $0x68] sm:$0xf]
    %v118 = vld [vmem:[#allocation7 + $0x6c] sm:$0xf]
    %v119 = vld [vmem:[#allocation7 + $0x70] sm:$0xf]
    %v120 = vld [vmem:[#allocation7 + $0x74] sm:$0xf]
    %v121 = vld [vmem:[#allocation7 + $0x78] sm:$0xf]
    %v122 = vld [vmem:[#allocation7 + $0x7c] sm:$0xf]
    %v123 = vld [vmem:[#allocation7 + $0x80] sm:$0xf]
    %v124 = vld [vmem:[#allocation7 + $0x84] sm:$0xf]
    %v125 = vld [vmem:[#allocation7 + $0x88] sm:$0xf]
    %v126 = vld [vmem:[#allocation7 + $0x8c] sm:$0xf]
    %v127 = vld [vmem:[#allocation7 + $0x90] sm:$0xf]
    %v128 = vld [vmem:[#allocation7 + $0x94] sm:$0xf]
    %v129 = vld [vmem:[#allocation7 + $0x98] sm:$0xf]
    %v130 = vld [vmem:[#allocation7 + $0x9c] sm:$0xf]
    %v131 = vld [vmem:[#allocation7 + $0xa0] sm:$0xf]
    %v132 = vld [vmem:[#allocation7 + $0xa4] sm:$0xf]
    %v133 = vld [vmem:[#allocation7 + $0xa8] sm:$0xf]
    %v134 = vld [vmem:[#allocation7 + $0xac] sm:$0xf]
    %v135 = vld [vmem:[#allocation7 + $0xb0] sm:$0xf]
    %v136 = vld [vmem:[#allocation7 + $0xb4] sm:$0xf]
    %v137 = vld [vmem:[#allocation7 + $0xb8] sm:$0xf]
    %v138 = vld [vmem:[#allocation7 + $0xbc] sm:$0xf]
    %v139 = vld [vmem:[#allocation7 + $0xc0] sm:$0xf]
    %v140 = vld [vmem:[#allocation7 + $0xc4] sm:$0xf]
    %v141 = vld [vmem:[#allocation7 + $0xc8] sm:$0xf]
    %v142 = vld [vmem:[#allocation7 + $0xcc] sm:$0xf]
    %v143 = vld [vmem:[#allocation7 + $0xd0] sm:$0xf]
    %v144 = vld [vmem:[#allocation7 + $0xd4] sm:$0xf]
    %v145 = vld [vmem:[#allocation7 + $0xd8] sm:$0xf]
    %v146 = vld [vmem:[#allocation7 + $0xdc] sm:$0xf]
    %v147 = vld [vmem:[#allocation7 + $0xe0] sm:$0xf]
    %v148 = vld [vmem:[#allocation7 + $0xe4] sm:$0xf]
    %v149 = vld [vmem:[#allocation7 + $0xe8] sm:$0xf]
    %v150 = vld [vmem:[#allocation7 + $0xec] sm:$0xf]
    %v151 = vld [vmem:[#allocation7 + $0xf0] sm:$0xf]
    %v152 = vld [vmem:[#allocation7 + $0xf4] sm:$0xf]
    %v153 = vld [vmem:[#allocation7 + $0xf8] sm:$0xf]
    %v154 = vld [vmem:[#allocation7 + $0xfc] sm:$0xf]
    %v155 = vld [vmem:[#allocation7 + $0x100] sm:$0xf]
    %v156 = vld [vmem:[#allocation7 + $0x104] sm:$0xf]
    %v157 = vld [vmem:[#allocation7 + $0x108] sm:$0xf]
    %v158 = vld [vmem:[#allocation7 + $0x10c] sm:$0xf]
    %v159 = vld [vmem:[#allocation7 + $0x110] sm:$0xf]
    %v160 = vld [vmem:[#allocation7 + $0x114] sm:$0xf]
    %v161 = vld [vmem:[#allocation7 + $0x118] sm:$0xf]
    %v162 = vld [vmem:[#allocation7 + $0x11c] sm:$0xf]
    %v163 = vld [vmem:[#allocation7 + $0x120] sm:$0xf]
    %v164 = vld [vmem:[#allocation7 + $0x124] sm:$0xf]
    %v165 = vld [vmem:[#allocation7 + $0x128] sm:$0xf]
    %v166 = vld [vmem:[#allocation7 + $0x12c] sm:$0xf]
    %v167 = vld [vmem:[#allocation7 + $0x130] sm:$0xf]
    %v168 = vld [vmem:[#allocation7 + $0x134] sm:$0xf]
    %v169 = vld [vmem:[#allocation7 + $0x138] sm:$0xf]
    %v170 = vld [vmem:[#allocation7 + $0x13c] sm:$0xf]
    %v171 = vld [vmem:[#allocation7 + $0x140] sm:$0xf]
    %v172 = vld [vmem:[#allocation7 + $0x144] sm:$0xf]
    %v173 = vld [vmem:[#allocation7 + $0x148] sm:$0xf]
    %v174 = vld [vmem:[#allocation7 + $0x14c] sm:$0xf]
    %v175 = vld [vmem:[#allocation7 + $0x150] sm:$0xf]
    %v176 = vld [vmem:[#allocation7 + $0x154] sm:$0xf]
    %v177 = vld [vmem:[#allocation7 + $0x158] sm:$0xf]
    %v178 = vld [vmem:[#allocation7 + $0x15c] sm:$0xf]
    %v179 = vld [vmem:[#allocation7 + $0x160] sm:$0xf]
    %v180 = vld [vmem:[#allocation7 + $0x164] sm:$0xf]
    %v181 = vld [vmem:[#allocation7 + $0x168] sm:$0xf]
    %v182 = vld [vmem:[#allocation7 + $0x16c] sm:$0xf]
    %v183 = vld [vmem:[#allocation7 + $0x170] sm:$0xf]
    %v184 = vld [vmem:[#allocation7 + $0x174] sm:$0xf]
    %v185 = vld [vmem:[#allocation7 + $0x178] sm:$0xf]
    %v186 = vld [vmem:[#allocation7 + $0x17c] sm:$0xf]
    %v187 = vld [vmem:[#allocation7 + $0x180] sm:$0xf]
    %v188 = vld [vmem:[#allocation7 + $0x184] sm:$0xf]
    %v189 = vld [vmem:[#allocation7 + $0x188] sm:$0xf]
    %v190 = vld [vmem:[#allocation7 + $0x18c] sm:$0xf]
    %v191 = vld [vmem:[#allocation7 + $0x190] sm:$0xf]
    %v192 = vld [vmem:[#allocation7 + $0x194] sm:$0xf]
    %v193 = vld [vmem:[#allocation7 + $0x198] sm:$0xf]
    %v194 = vld [vmem:[#allocation7 + $0x19c] sm:$0xf]
    %v195 = vld [vmem:[#allocation7 + $0x1a0] sm:$0xf]
    %v196 = vld [vmem:[#allocation7 + $0x1a4] sm:$0xf]
    %v197 = vld [vmem:[#allocation7 + $0x1a8] sm:$0xf]
    %v198 = vld [vmem:[#allocation7 + $0x1ac] sm:$0xf]
    %v199 = vld [vmem:[#allocation7 + $0x1b0] sm:$0xf]
    %v200 = vld [vmem:[#allocation7 + $0x1b4] sm:$0xf]
    %v201 = vld [vmem:[#allocation7 + $0x1b8] sm:$0xf]
    %v202 = vld [vmem:[#allocation7 + $0x1bc] sm:$0xf]
    %v203 = vld [vmem:[#allocation7 + $0x1c0] sm:$0xf]
    %v204 = vld [vmem:[#allocation7 + $0x1c4] sm:$0xf]
    %v205 = vld [vmem:[#allocation7 + $0x1c8] sm:$0xf]
    %v206 = vld [vmem:[#allocation7 + $0x1cc] sm:$0xf]
    %v207 = vld [vmem:[#allocation7 + $0x1d0] sm:$0xf]
    %v208 = vld [vmem:[#allocation7 + $0x1d4] sm:$0xf]
    %v209 = vld [vmem:[#allocation7 + $0x1d8] sm:$0xf]
    %v210 = vld [vmem:[#allocation7 + $0x1dc] sm:$0xf]
    %v211 = vld [vmem:[#allocation7 + $0x1e0] sm:$0xf]
    %v212 = vld [vmem:[#allocation7 + $0x1e4] sm:$0xf]
    %v213 = vld [vmem:[#allocation7 + $0x1e8] sm:$0xf]
    %v214 = vld [vmem:[#allocation7 + $0x1ec] sm:$0xf]
    %v215 = vld [vmem:[#allocation7 + $0x1f0] sm:$0xf]
    %v216 = vld [vmem:[#allocation7 + $0x1f4] sm:$0xf]
    %v217 = vld [vmem:[#allocation7 + $0x1f8] sm:$0xf]
    %v218 = vld [vmem:[#allocation7 + $0x1fc] sm:$0xf]
    %v223 = vunpack.c.l.b16 %v87
    %v224 = vunpack.c.h.b16 %v87
    %v225 = vunpack.c.l.b16 %v88
    %v226 = vunpack.c.h.b16 %v88
    %v227 = vunpack.c.l.b16 %v89
    %v228 = vunpack.c.h.b16 %v89
    %v229 = vunpack.c.l.b16 %v90
    %v230 = vunpack.c.h.b16 %v90
    %v231 = vpack.c.b16 %v223, %v223
    %v232 = vpack.c.b16 %v224, %v224
    %v233 = vpack.c.b16 %v225, %v225
    %v234 = vpack.c.b16 %v226, %v226
    %v235 = vpack.c.b16 %v227, %v227
    %v236 = vpack.c.b16 %v228, %v228
    %v237 = vpack.c.b16 %v229, %v229
    %v238 = vpack.c.b16 %v230, %v230
    %v375 = vunpack.c.l.b16 %v91
    %v376 = vunpack.c.l.b16 %v92
    %v377 = vunpack.c.l.b16 %v93
    %v378 = vunpack.c.l.b16 %v94
    %v379 = vunpack.c.l.b16 %v95
    %v380 = vunpack.c.l.b16 %v96
    %v381 = vunpack.c.l.b16 %v97
    %v382 = vunpack.c.l.b16 %v98
    %v383 = vunpack.c.l.b16 %v99
    %v384 = vunpack.c.l.b16 %v100
    %v385 = vunpack.c.l.b16 %v101
    %v386 = vunpack.c.l.b16 %v102
    %v387 = vunpack.c.l.b16 %v103
    %v388 = vunpack.c.l.b16 %v104
    %v389 = vunpack.c.l.b16 %v105
    %v390 = vunpack.c.l.b16 %v106
    %v391 = vunpack.c.l.b16 %v107
    %v392 = vunpack.c.l.b16 %v108
    %v393 = vunpack.c.l.b16 %v109
    %v394 = vunpack.c.l.b16 %v110
    %v395 = vunpack.c.l.b16 %v111
    %v396 = vunpack.c.l.b16 %v112
    %v397 = vunpack.c.l.b16 %v113
    %v398 = vunpack.c.l.b16 %v114
    %v399 = vunpack.c.l.b16 %v115
    %v400 = vunpack.c.l.b16 %v116
    %v401 = vunpack.c.l.b16 %v117
    %v402 = vunpack.c.l.b16 %v118
    %v403 = vunpack.c.l.b16 %v119
    %v404 = vunpack.c.l.b16 %v120
    %v405 = vunpack.c.l.b16 %v121
    %v406 = vunpack.c.l.b16 %v122
    %v407 = vunpack.c.l.b16 %v123
    %v408 = vunpack.c.l.b16 %v124
    %v409 = vunpack.c.l.b16 %v125
    %v410 = vunpack.c.l.b16 %v126
    %v411 = vunpack.c.l.b16 %v127
    %v412 = vunpack.c.l.b16 %v128
    %v413 = vunpack.c.l.b16 %v129
    %v414 = vunpack.c.l.b16 %v130
    %v415 = vunpack.c.l.b16 %v131
    %v416 = vunpack.c.l.b16 %v132
    %v417 = vunpack.c.l.b16 %v133
    %v418 = vunpack.c.l.b16 %v134
    %v419 = vunpack.c.l.b16 %v135
    %v420 = vunpack.c.l.b16 %v136
    %v421 = vunpack.c.l.b16 %v137
    %v422 = vunpack.c.l.b16 %v138
    %v423 = vunpack.c.l.b16 %v139
    %v424 = vunpack.c.l.b16 %v140
    %v425 = vunpack.c.l.b16 %v141
    %v426 = vunpack.c.l.b16 %v142
    %v427 = vunpack.c.l.b16 %v143
    %v428 = vunpack.c.l.b16 %v144
    %v429 = vunpack.c.l.b16 %v145
    %v430 = vunpack.c.l.b16 %v146
    %v431 = vunpack.c.l.b16 %v147
    %v432 = vunpack.c.l.b16 %v148
    %v433 = vunpack.c.l.b16 %v149
    %v434 = vunpack.c.l.b16 %v150
    %v435 = vunpack.c.l.b16 %v151
    %v436 = vunpack.c.l.b16 %v152
    %v437 = vunpack.c.l.b16 %v153
    %v438 = vunpack.c.l.b16 %v154
    %v439 = vunpack.c.l.b16 %v155
    %v440 = vunpack.c.l.b16 %v156
    %v441 = vunpack.c.l.b16 %v157
    %v442 = vunpack.c.l.b16 %v158
    %v443 = vunpack.c.l.b16 %v159
    %v444 = vunpack.c.l.b16 %v160
    %v445 = vunpack.c.l.b16 %v161
    %v446 = vunpack.c.l.b16 %v162
    %v447 = vunpack.c.l.b16 %v163
    %v448 = vunpack.c.l.b16 %v164
    %v449 = vunpack.c.l.b16 %v165
    %v450 = vunpack.c.l.b16 %v166
    %v451 = vunpack.c.l.b16 %v167
    %v452 = vunpack.c.l.b16 %v168
    %v453 = vunpack.c.l.b16 %v169
    %v454 = vunpack.c.l.b16 %v170
    %v455 = vunpack.c.l.b16 %v171
    %v456 = vunpack.c.l.b16 %v172
    %v457 = vunpack.c.l.b16 %v173
    %v458 = vunpack.c.l.b16 %v174
    %v459 = vunpack.c.l.b16 %v175
    %v460 = vunpack.c.l.b16 %v176
    %v461 = vunpack.c.l.b16 %v177
    %v462 = vunpack.c.l.b16 %v178
    %v463 = vunpack.c.l.b16 %v179
    %v464 = vunpack.c.l.b16 %v180
    %v465 = vunpack.c.l.b16 %v181
    %v466 = vunpack.c.l.b16 %v182
    %v467 = vunpack.c.l.b16 %v183
    %v468 = vunpack.c.l.b16 %v184
    %v469 = vunpack.c.l.b16 %v185
    %v470 = vunpack.c.l.b16 %v186
    %v471 = vunpack.c.l.b16 %v187
    %v472 = vunpack.c.l.b16 %v188
    %v473 = vunpack.c.l.b16 %v189
    %v474 = vunpack.c.l.b16 %v190
    %v475 = vunpack.c.l.b16 %v191
    %v476 = vunpack.c.l.b16 %v192
    %v477 = vunpack.c.l.b16 %v193
    %v478 = vunpack.c.l.b16 %v194
    %v479 = vunpack.c.l.b16 %v195
    %v480 = vunpack.c.l.b16 %v196
    %v481 = vunpack.c.l.b16 %v197
    %v482 = vunpack.c.l.b16 %v198
    %v483 = vunpack.c.l.b16 %v199
    %v484 = vunpack.c.l.b16 %v200
    %v485 = vunpack.c.l.b16 %v201
    %v486 = vunpack.c.l.b16 %v202
    %v487 = vunpack.c.l.b16 %v203
    %v488 = vunpack.c.l.b16 %v204
    %v489 = vunpack.c.l.b16 %v205
    %v490 = vunpack.c.l.b16 %v206
    %v491 = vunpack.c.l.b16 %v207
    %v492 = vunpack.c.l.b16 %v208
    %v493 = vunpack.c.l.b16 %v209
    %v494 = vunpack.c.l.b16 %v210
    %v495 = vunpack.c.l.b16 %v211
    %v496 = vunpack.c.l.b16 %v212
    %v497 = vunpack.c.l.b16 %v213
    %v498 = vunpack.c.l.b16 %v214
    %v499 = vunpack.c.l.b16 %v215
    %v500 = vunpack.c.l.b16 %v216
    %v501 = vunpack.c.l.b16 %v217
    %v502 = vunpack.c.l.b16 %v218
    %v503 = vpack.c.b16 %v376, %v375
    %v504 = vpack.c.b16 %v378, %v377
    %v505 = vpack.c.b16 %v380, %v379
    %v506 = vpack.c.b16 %v382, %v381
    %v507 = vpack.c.b16 %v384, %v383
    %v508 = vpack.c.b16 %v386, %v385
    %v509 = vpack.c.b16 %v388, %v387
    %v510 = vpack.c.b16 %v390, %v389
    %v511 = vpack.c.b16 %v392, %v391
    %v512 = vpack.c.b16 %v394, %v393
    %v513 = vpack.c.b16 %v396, %v395
    %v514 = vpack.c.b16 %v398, %v397
    %v515 = vpack.c.b16 %v400, %v399
    %v516 = vpack.c.b16 %v402, %v401
    %v517 = vpack.c.b16 %v404, %v403
    %v518 = vpack.c.b16 %v406, %v405
    %v519 = vpack.c.b16 %v408, %v407
    %v520 = vpack.c.b16 %v410, %v409
    %v521 = vpack.c.b16 %v412, %v411
    %v522 = vpack.c.b16 %v414, %v413
    %v523 = vpack.c.b16 %v416, %v415
    %v524 = vpack.c.b16 %v418, %v417
    %v525 = vpack.c.b16 %v420, %v419
    %v526 = vpack.c.b16 %v422, %v421
    %v527 = vpack.c.b16 %v424, %v423
    %v528 = vpack.c.b16 %v426, %v425
    %v529 = vpack.c.b16 %v428, %v427
    %v530 = vpack.c.b16 %v430, %v429
    %v531 = vpack.c.b16 %v432, %v431
    %v532 = vpack.c.b16 %v434, %v433
    %v533 = vpack.c.b16 %v436, %v435
    %v534 = vpack.c.b16 %v438, %v437
    %v535 = vpack.c.b16 %v440, %v439
    %v536 = vpack.c.b16 %v442, %v441
    %v537 = vpack.c.b16 %v444, %v443
    %v538 = vpack.c.b16 %v446, %v445
    %v539 = vpack.c.b16 %v448, %v447
    %v540 = vpack.c.b16 %v450, %v449
    %v541 = vpack.c.b16 %v452, %v451
    %v542 = vpack.c.b16 %v454, %v453
    %v543 = vpack.c.b16 %v456, %v455
    %v544 = vpack.c.b16 %v458, %v457
    %v545 = vpack.c.b16 %v460, %v459
    %v546 = vpack.c.b16 %v462, %v461
    %v547 = vpack.c.b16 %v464, %v463
    %v548 = vpack.c.b16 %v466, %v465
    %v549 = vpack.c.b16 %v468, %v467
    %v550 = vpack.c.b16 %v470, %v469
    %v551 = vpack.c.b16 %v472, %v471
    %v552 = vpack.c.b16 %v474, %v473
    %v553 = vpack.c.b16 %v476, %v475
    %v554 = vpack.c.b16 %v478, %v477
    %v555 = vpack.c.b16 %v480, %v479
    %v556 = vpack.c.b16 %v482, %v481
    %v557 = vpack.c.b16 %v484, %v483
    %v558 = vpack.c.b16 %v486, %v485
    %v559 = vpack.c.b16 %v488, %v487
    %v560 = vpack.c.b16 %v490, %v489
    %v561 = vpack.c.b16 %v492, %v491
    %v562 = vpack.c.b16 %v494, %v493
    %v563 = vpack.c.b16 %v496, %v495
    %v564 = vpack.c.b16 %v498, %v497
    %v565 = vpack.c.b16 %v500, %v499
    %v566 = vpack.c.b16 %v502, %v501
    %631 = vmatprep.subr.bf16.mxu0 0
    %632 = vmatpush1.bf16.msra.mxu0 %v503
    %633 = vmatprep.subr.bf16.mxu0 0
    %634 = vmatpush1.bf16.msra.mxu0 %v504
    %635 = vmatprep.subr.bf16.mxu0 0
    %636 = vmatpush1.bf16.msra.mxu0 %v505
    %637 = vmatprep.subr.bf16.mxu0 0
    %638 = vmatpush1.bf16.msra.mxu0 %v506
    %639 = vmatprep.subr.bf16.mxu0 0
    %640 = vmatpush1.bf16.msra.mxu0 %v507
    %641 = vmatprep.subr.bf16.mxu0 0
    %642 = vmatpush1.bf16.msra.mxu0 %v508
    %643 = vmatprep.subr.bf16.mxu0 0
    %644 = vmatpush1.bf16.msra.mxu0 %v509
    %645 = vmatprep.subr.bf16.mxu0 0
    %646 = vmatpush1.bf16.msra.mxu0 %v510
    %647 = vmatprep.subr.bf16.mxu0 0
    %648 = vmatpush1.bf16.msra.mxu0 %v511
    %649 = vmatprep.subr.bf16.mxu0 0
    %650 = vmatpush1.bf16.msra.mxu0 %v512
    %651 = vmatprep.subr.bf16.mxu0 0
    %652 = vmatpush1.bf16.msra.mxu0 %v513
    %653 = vmatprep.subr.bf16.mxu0 0
    %654 = vmatpush1.bf16.msra.mxu0 %v514
    %655 = vmatprep.subr.bf16.mxu0 0
    %656 = vmatpush1.bf16.msra.mxu0 %v515
    %657 = vmatprep.subr.bf16.mxu0 0
    %658 = vmatpush1.bf16.msra.mxu0 %v516
    %659 = vmatprep.subr.bf16.mxu0 0
    %660 = vmatpush1.bf16.msra.mxu0 %v517
    %661 = vmatprep.subr.bf16.mxu0 0
    %662 = vmatpush1.bf16.msra.mxu0 %v518
    %663 = vmatprep.mubr.bf16.mxu0 %v232
    %664 = vmatmul.mubr.bf16.gmra.mrb[0].mxu0 %v231
    %v665 = vpop.f32.mrb[0].mxu0
    %v666 = vadd.f32 0.0, %v665
    %v667 = vpop.f32.mrb[0].mxu0
    %v668 = vpop.f32.mrb[0].mxu0
    %v669 = vpop.f32.mrb[0].mxu0
    %670 = vdwg.mxu0
    %671 = vmatprep.subr.bf16.mxu0 0
    %672 = vmatpush1.bf16.msra.mxu0 %v519
    %673 = vmatprep.subr.bf16.mxu0 0
    %674 = vmatpush1.bf16.msra.mxu0 %v520
    %675 = vmatprep.subr.bf16.mxu0 0
    %676 = vmatpush1.bf16.msra.mxu0 %v521
    %677 = vmatprep.subr.bf16.mxu0 0
    %678 = vmatpush1.bf16.msra.mxu0 %v522
    %679 = vmatprep.subr.bf16.mxu0 0
    %680 = vmatpush1.bf16.msra.mxu0 %v523
    %681 = vmatprep.subr.bf16.mxu0 0
    %682 = vmatpush1.bf16.msra.mxu0 %v524
    %683 = vmatprep.subr.bf16.mxu0 0
    %684 = vmatpush1.bf16.msra.mxu0 %v525
    %685 = vmatprep.subr.bf16.mxu0 0
    %686 = vmatpush1.bf16.msra.mxu0 %v526
    %687 = vmatprep.subr.bf16.mxu0 0
    %688 = vmatpush1.bf16.msra.mxu0 %v527
    %689 = vmatprep.subr.bf16.mxu0 0
    %690 = vmatpush1.bf16.msra.mxu0 %v528
    %691 = vmatprep.subr.bf16.mxu0 0
    %692 = vmatpush1.bf16.msra.mxu0 %v529
    %693 = vmatprep.subr.bf16.mxu0 0
    %694 = vmatpush1.bf16.msra.mxu0 %v530
    %695 = vmatprep.subr.bf16.mxu0 0
    %696 = vmatpush1.bf16.msra.mxu0 %v531
    %697 = vmatprep.subr.bf16.mxu0 0
    %698 = vmatpush1.bf16.msra.mxu0 %v532
    %699 = vmatprep.subr.bf16.mxu0 0
    %700 = vmatpush1.bf16.msra.mxu0 %v533
    %701 = vmatprep.subr.bf16.mxu0 0
    %702 = vmatpush1.bf16.msra.mxu0 %v534
    %703 = vmatprep.mubr.bf16.mxu0 %v234
    %704 = vmatmul.mubr.bf16.gmra.mrb[0].mxu0 %v233
    %v705 = vpop.f32.mrb[0].mxu0
    %v706 = vadd.f32 %v666, %v705
    %v707 = vpop.f32.mrb[0].mxu0
    %v708 = vpop.f32.mrb[0].mxu0
    %v709 = vpop.f32.mrb[0].mxu0
    %710 = vdwg.mxu0
    %711 = vmatprep.subr.bf16.mxu0 0
    %712 = vmatpush1.bf16.msra.mxu0 %v535
    %713 = vmatprep.subr.bf16.mxu0 0
    %714 = vmatpush1.bf16.msra.mxu0 %v536
    %715 = vmatprep.subr.bf16.mxu0 0
    %716 = vmatpush1.bf16.msra.mxu0 %v537
    %717 = vmatprep.subr.bf16.mxu0 0
    %718 = vmatpush1.bf16.msra.mxu0 %v538
    %719 = vmatprep.subr.bf16.mxu0 0
    %720 = vmatpush1.bf16.msra.mxu0 %v539
    %721 = vmatprep.subr.bf16.mxu0 0
    %722 = vmatpush1.bf16.msra.mxu0 %v540
    %723 = vmatprep.subr.bf16.mxu0 0
    %724 = vmatpush1.bf16.msra.mxu0 %v541
    %725 = vmatprep.subr.bf16.mxu0 0
    %726 = vmatpush1.bf16.msra.mxu0 %v542
    %727 = vmatprep.subr.bf16.mxu0 0
    %728 = vmatpush1.bf16.msra.mxu0 %v543
    %729 = vmatprep.subr.bf16.mxu0 0
    %730 = vmatpush1.bf16.msra.mxu0 %v544
    %731 = vmatprep.subr.bf16.mxu0 0
    %732 = vmatpush1.bf16.msra.mxu0 %v545
    %733 = vmatprep.subr.bf16.mxu0 0
    %734 = vmatpush1.bf16.msra.mxu0 %v546
    %735 = vmatprep.subr.bf16.mxu0 0
    %736 = vmatpush1.bf16.msra.mxu0 %v547
    %737 = vmatprep.subr.bf16.mxu0 0
    %738 = vmatpush1.bf16.msra.mxu0 %v548
    %739 = vmatprep.subr.bf16.mxu0 0
    %740 = vmatpush1.bf16.msra.mxu0 %v549
    %741 = vmatprep.subr.bf16.mxu0 0
    %742 = vmatpush1.bf16.msra.mxu0 %v550
    %743 = vmatprep.mubr.bf16.mxu0 %v236
    %744 = vmatmul.mubr.bf16.gmra.mrb[0].mxu0 %v235
    %v745 = vpop.f32.mrb[0].mxu0
    %v746 = vadd.f32 %v706, %v745
    %v747 = vpop.f32.mrb[0].mxu0
    %v748 = vpop.f32.mrb[0].mxu0
    %v749 = vpop.f32.mrb[0].mxu0
    %750 = vdwg.mxu0
    %751 = vmatprep.subr.bf16.mxu0 0
    %752 = vmatpush1.bf16.msra.mxu0 %v551
    %753 = vmatprep.subr.bf16.mxu0 0
    %754 = vmatpush1.bf16.msra.mxu0 %v552
    %755 = vmatprep.subr.bf16.mxu0 0
    %756 = vmatpush1.bf16.msra.mxu0 %v553
    %757 = vmatprep.subr.bf16.mxu0 0
    %758 = vmatpush1.bf16.msra.mxu0 %v554
    %759 = vmatprep.subr.bf16.mxu0 0
    %760 = vmatpush1.bf16.msra.mxu0 %v555
    %761 = vmatprep.subr.bf16.mxu0 0
    %762 = vmatpush1.bf16.msra.mxu0 %v556
    %763 = vmatprep.subr.bf16.mxu0 0
    %764 = vmatpush1.bf16.msra.mxu0 %v557
    %765 = vmatprep.subr.bf16.mxu0 0
    %766 = vmatpush1.bf16.msra.mxu0 %v558
    %767 = vmatprep.subr.bf16.mxu0 0
    %768 = vmatpush1.bf16.msra.mxu0 %v559
    %769 = vmatprep.subr.bf16.mxu0 0
    %770 = vmatpush1.bf16.msra.mxu0 %v560
    %771 = vmatprep.subr.bf16.mxu0 0
    %772 = vmatpush1.bf16.msra.mxu0 %v561
    %773 = vmatprep.subr.bf16.mxu0 0
    %774 = vmatpush1.bf16.msra.mxu0 %v562
    %775 = vmatprep.subr.bf16.mxu0 0
    %776 = vmatpush1.bf16.msra.mxu0 %v563
    %777 = vmatprep.subr.bf16.mxu0 0
    %778 = vmatpush1.bf16.msra.mxu0 %v564
    %779 = vmatprep.subr.bf16.mxu0 0
    %780 = vmatpush1.bf16.msra.mxu0 %v565
    %781 = vmatprep.subr.bf16.mxu0 0
    %782 = vmatpush1.bf16.msra.mxu0 %v566
    %783 = vmatprep.mubr.bf16.mxu0 %v238
    %784 = vmatmul.mubr.bf16.gmra.mrb[0].mxu0 %v237
    %v785 = vpop.f32.mrb[0].mxu0
    %v786 = vadd.f32 %v746, %v785
    %v787 = vpop.f32.mrb[0].mxu0
    %v788 = vpop.f32.mrb[0].mxu0
    %v789 = vpop.f32.mrb[0].mxu0
    %790 = vdwg.mxu0
    %v791 = vmul.f32 %v786, 1.3333334
    %v792 = vld [vmem:[%s3] sm:$0x1]
    %v794 = vlaneseq
    %v795 = vshrl.u32 %v794, 7
    %v796 = vsub.s32 0, %v795
    %v797 = vrot.slane %v792, %v796
    %v799 = vadd.f32 %v791, %v797
    %v800 = vmax.f32 %v799, 0.0
    %v801 = vld [vmem:[%s4] sm:$0xf]
    %v802 = vunpack.c.l.bf16 %v801
    %v803 = vmul.f32 %v802, 2.0
    %v804 = vmul.f32 %v800, %v803
    %v805 = vpack.c.bf16 %v804, %v804
    %v806 = vld [vmem:[#allocation8] sm:$0xf]
    %v807 = vld [vmem:[#allocation8 + $0x4] sm:$0xf]
    %v808 = vld [vmem:[#allocation8 + $0x8] sm:$0xf]
    %v809 = vld [vmem:[#allocation8 + $0xc] sm:$0xf]
    %v810 = vld [vmem:[#allocation8 + $0x10] sm:$0xf]
    %v811 = vld [vmem:[#allocation8 + $0x14] sm:$0xf]
    %v812 = vld [vmem:[#allocation8 + $0x18] sm:$0xf]
    %v813 = vld [vmem:[#allocation8 + $0x1c] sm:$0xf]
    %v814 = vld [vmem:[#allocation8 + $0x20] sm:$0xf]
    %v815 = vld [vmem:[#allocation8 + $0x24] sm:$0xf]
    %v816 = vld [vmem:[#allocation8 + $0x28] sm:$0xf]
    %v817 = vld [vmem:[#allocation8 + $0x2c] sm:$0xf]
    %v818 = vld [vmem:[#allocation8 + $0x30] sm:$0xf]
    %v819 = vld [vmem:[#allocation8 + $0x34] sm:$0xf]
    %v820 = vld [vmem:[#allocation8 + $0x38] sm:$0xf]
    %v821 = vld [vmem:[#allocation8 + $0x3c] sm:$0xf]
    %v822 = vld [vmem:[%s6] sm:$0x1]
    %v824 = vlaneseq
    %v825 = vshrl.u32 %v824, 7
    %v826 = vsub.s32 0, %v825
    %v827 = vrot.slane %v822, %v826
    %v845 = vunpack.c.l.b16 %v806
    %v846 = vunpack.c.l.b16 %v807
    %v847 = vunpack.c.l.b16 %v808
    %v848 = vunpack.c.l.b16 %v809
    %v849 = vunpack.c.l.b16 %v810
    %v850 = vunpack.c.l.b16 %v811
    %v851 = vunpack.c.l.b16 %v812
    %v852 = vunpack.c.l.b16 %v813
    %v853 = vunpack.c.l.b16 %v814
    %v854 = vunpack.c.l.b16 %v815
    %v855 = vunpack.c.l.b16 %v816
    %v856 = vunpack.c.l.b16 %v817
    %v857 = vunpack.c.l.b16 %v818
    %v858 = vunpack.c.l.b16 %v819
    %v859 = vunpack.c.l.b16 %v820
    %v860 = vunpack.c.l.b16 %v821
    %v861 = vpack.c.b16 %v846, %v845
    %v862 = vpack.c.b16 %v848, %v847
    %v863 = vpack.c.b16 %v850, %v849
    %v864 = vpack.c.b16 %v852, %v851
    %v865 = vpack.c.b16 %v854, %v853
    %v866 = vpack.c.b16 %v856, %v855
    %v867 = vpack.c.b16 %v858, %v857
    %v868 = vpack.c.b16 %v860, %v859
    %877 = vmatprep.subr.bf16.mxu0 0
    %878 = vmatpush1.bf16.msra.mxu0 %v861
    %879 = vmatprep.subr.bf16.mxu0 0
    %880 = vmatpush1.bf16.msra.mxu0 %v862
    %881 = vmatprep.subr.bf16.mxu0 0
    %882 = vmatpush1.bf16.msra.mxu0 %v863
    %883 = vmatprep.subr.bf16.mxu0 0
    %884 = vmatpush1.bf16.msra.mxu0 %v864
    %885 = vmatprep.subr.bf16.mxu0 0
    %886 = vmatpush1.bf16.msra.mxu0 %v865
    %887 = vmatprep.subr.bf16.mxu0 0
    %888 = vmatpush1.bf16.msra.mxu0 %v866
    %889 = vmatprep.subr.bf16.mxu0 0
    %890 = vmatpush1.bf16.msra.mxu0 %v867
    %891 = vmatprep.subr.bf16.mxu0 0
    %892 = vmatpush1.bf16.msra.mxu0 %v868
    %893 = vmatprep.subr.bf16.mxu0 0
    %894 = vmatpush1.bf16.msra.mxu0 0
    %895 = vmatprep.subr.bf16.mxu0 0
    %896 = vmatpush1.bf16.msra.mxu0 0
    %897 = vmatprep.subr.bf16.mxu0 0
    %898 = vmatpush1.bf16.msra.mxu0 0
    %899 = vmatprep.subr.bf16.mxu0 0
    %900 = vmatpush1.bf16.msra.mxu0 0
    %901 = vmatprep.subr.bf16.mxu0 0
    %902 = vmatpush1.bf16.msra.mxu0 0
    %903 = vmatprep.subr.bf16.mxu0 0
    %904 = vmatpush1.bf16.msra.mxu0 0
    %905 = vmatprep.subr.bf16.mxu0 0
    %906 = vmatpush1.bf16.msra.mxu0 0
    %907 = vmatprep.subr.bf16.mxu0 0
    %908 = vmatpush1.bf16.msra.mxu0 0
    %909 = vmatprep.mubr.bf16.mxu0 0
    %910 = vmatmul.mubr.bf16.gmra.mrb[0].mxu0 %v805
    %v911 = vpop.f32.mrb[0].mxu0
    %v912 = vadd.f32 %v827, %v911
    %v913 = vpop.f32.mrb[0].mxu0
    %v914 = vpop.f32.mrb[0].mxu0
    %v915 = vpop.f32.mrb[0].mxu0
    %916 = vdwg.mxu0
    %917 = vst [vmem:[#allocation10] sm:$0xff] %v912
    // Predicated region
    $region46: #{tpu_custom_call.1} parent=1 // pred_check
      _
    $region47: #{tpu_custom_call.1} parent=1 // pred_check_branch
      %919 = sbr.rel (0) target = $region49
    $region48: #{tpu_custom_call.1} parent=1 // pred_region
      %s921 = ssub.s32 128, 128
      %922 = vsyncadd [#allocation4], %s921
      %s924 = sshll.u32 [#allocation10], 4
      %s925 = int_to_ptr.vmem [resolvable:$true] %s924
      %927 = dma.vmem_to_hbm [thread:$0]  %s925, 128, %s7, [#allocation4]
    $region49: #{tpu_custom_call.1} parent=1 // pred_fallthru
      _
    // Predicated region
    $region50: #{tpu_custom_call.1} parent=1 // pred_check
      _
    $region51: #{tpu_custom_call.1} parent=1 // pred_check_branch
      %929 = sbr.rel (0) target = $region53
    $region52: #{tpu_custom_call.1} parent=1 // pred_region
      %930 = dma.done [#allocation4], 128
    $region53: #{tpu_custom_call.1} parent=1 // pred_fallthru
      _
    %931 = vsyncpa [#allocation3], 1
    %932 = vsyncpa [#allocation6], 1
    %933 = vsyncpa [#allocation9], 1
    %934 = vsyncpa [#allocation4], 1

</llo_original>
